<compile_context>
chip_gen: v6e
topology: v6e:2x2x1
jax: 0.10.0
libtpu: 0.0.40
codegen_flags: <defaults>
</compile_context>

<pallas_src>
import functools

import jax
import jax.numpy as jnp
from jax import lax
from jax.experimental import pallas as pl
from jax.experimental.pallas import tpu as pltpu


def _round_up(x, m):
    return ((x + m - 1) // m) * m


def _plan_tiles(n_tok, S, H, itemsize, target_tokens=512, max_chunks=8):
    """Pick (T, Tc, C, pos_mode).

    T  : tokens per grid step (multiple of 8).
    Tc : tokens per gather chunk (multiple of 8, T = C * Tc).
    pos_mode:
      "slice": T | S. Resident (S, H) position table; each chunk reads a
               contiguous slab at a Tc-aligned dynamic offset.
      "tile" : S | Tc (and S | T). Resident (S, H) table; every chunk sees the
               same tiled (Tc, H) pattern, computed once per step.
      "block": fallback for awkward S — positions are materialized per
               flattened token in the wrapper and streamed as a (T, H) block.
    """
    target = max(8, (target_tokens // 8) * 8)

    def pick_chunks(T):
        valid = [c for c in range(1, max_chunks + 1)
                 if T % c == 0 and (T // c) % 8 == 0]
        pref = [c for c in valid if T // c >= 64]
        return max(pref) if pref else max(valid)

    resident_bytes = S * H * itemsize
    if S % 8 == 0 and resident_bytes <= 8 * 1024 * 1024:
        if S >= target:
            # largest divisor of S that is a multiple of 8 and <= target
            d = max((t for t in range(8, target + 1, 8) if S % t == 0),
                    default=None)
            if d is not None and d >= 64:
                T = d
                C = pick_chunks(T)
                return T, T // C, C, "slice"
            # fall through to "block"
        else:
            # Block = k whole sequences; cap so tiny inputs are not over-padded.
            k = min(max(1, target // S), -(-n_tok // S))
            T = S * k
            if k == 1:
                C = pick_chunks(T)
                return T, T // C, C, "slice"
            C = max(c for c in range(1, max_chunks + 1) if k % c == 0)
            return T, T // C, C, "tile"

    # Fallback: arbitrary S.
    T = min(target, _round_up(n_tok, 8))
    C = pick_chunks(T)
    return T, T // C, C, "block"


def _bert_embed_kernel(ids_ref, w_hbm, p_ref, g_ref, b_ref, o_ref,
                       gbuf, sem, *, T, Tc, C, S, pos_mode, eps):
    """One grid step = one block of T tokens, processed in C chunks of Tc rows.

    ids_ref : SMEM (n_tok_pad,) int32   scalar-prefetched token ids
    w_hbm   : ANY  (V, H)               word-embedding table (raw HBM ref)
    p_ref   : VMEM (S, H) or (T, H)     position rows (resident or per-block)
    g_ref   : VMEM (1, H)               LayerNorm gamma
    b_ref   : VMEM (1, H)               LayerNorm beta
    o_ref   : VMEM (T, H)               output block
    gbuf    : VMEM (2, Tc, H)           double-buffered gathered word rows
    sem     : DMA semaphores (2,)       one per gbuf parity slot
    """
    base = pl.multiple_of(pl.program_id(0) * T, T)

    # Hoisted once per grid step (JAX does not CSE broadcasts).
    g = g_ref[...].astype(jnp.float32)
    b = b_ref[...].astype(jnp.float32)

    if pos_mode == "tile":
        # Every chunk of every block sees the same tiled position pattern.
        pos_step = (p_ref[...] if Tc == S
                    else jnp.tile(p_ref[...], (Tc // S, 1))).astype(jnp.float32)
    elif pos_mode == "slice":
        # Offset of this block inside one sequence; a multiple of T (T | S).
        base_in_seq = pl.multiple_of(lax.rem(pl.program_id(0) * T, S), T)

    def issue(c):
        slot = c % 2
        off = base + c * Tc
        # Fully unrolled: one SMEM id read + one DMA descriptor per row; the
        # LLO co-issues these on the scalar / vector-misc slots.
        for t in range(Tc):
            row = ids_ref[off + t]
            pltpu.make_async_copy(
                w_hbm.at[pl.ds(row, 1), :],
                gbuf.at[slot, pl.ds(t, 1), :],
                sem.at[slot],
            ).start()

    def wait(c):
        slot = c % 2
        # Single bulk wait: all Tc row-DMAs of this chunk signal sem[slot]; the
        # descriptor below is sized to exactly Tc rows (Tc * H * itemsize).
        pltpu.make_async_copy(
            w_hbm.at[pl.ds(0, Tc), :],
            gbuf.at[slot],
            sem.at[slot],
        ).wait()

    def compute(c):
        slot = c % 2
        if pos_mode == "tile":
            pos = pos_step
        elif pos_mode == "slice":
            off = pl.multiple_of(base_in_seq + c * Tc, Tc)
            pos = p_ref[pl.ds(off, Tc), :].astype(jnp.float32)
        else:  # "block": p_ref is this block's (T, H) position slab
            pos = p_ref[pl.ds(c * Tc, Tc), :].astype(jnp.float32)
        x = gbuf[slot].astype(jnp.float32) + pos
        mean = jnp.mean(x, axis=-1, keepdims=True)
        var = jnp.mean(jnp.square(x - mean), axis=-1, keepdims=True)  # biased, like nn.LayerNorm
        y = (x - mean) * lax.rsqrt(var + eps)
        o_ref[pl.ds(c * Tc, Tc), :] = (y * g + b).astype(o_ref.dtype)

    issue(0)
    for c in range(C):           # C is a small static int -> unrolled
        if c + 1 < C:
            issue(c + 1)         # next chunk's rows land while we compute c
        wait(c)
        compute(c)


def bert_embeddings(input_ids, word_emb, pos_emb, gamma, beta, *,
                    eps=1e-12, block_tokens=512):
    B, S = input_ids.shape
    V, H = word_emb.shape
    n_tok = B * S

    T, Tc, C, pos_mode = _plan_tiles(n_tok, S, H, word_emb.dtype.itemsize,
                                     target_tokens=block_tokens)
    assert V >= Tc, "vocab smaller than a gather chunk"
    n_tok_pad = _round_up(n_tok, T)
    n_blocks = n_tok_pad // T

    # Clamp ids (OOB ids would silently gather a wrong row) and pad to whole
    # blocks; padded tokens gather row 0 and are discarded afterwards.
    # Note: ids live in SMEM via scalar prefetch -> O(n_tok) SMEM; for very
    # large B*S, shard across multiple pallas_call invocations.
    ids = jnp.clip(input_ids.reshape(-1).astype(jnp.int32), 0, V - 1)
    ids = jnp.pad(ids, (0, n_tok_pad - n_tok))

    if pos_mode == "block":
        # Fallback: stream a per-block position slab (built once by XLA).
        pos_idx = jnp.arange(n_tok_pad, dtype=jnp.int32) % S
        pos_in = pos_emb[:S][pos_idx]                          # (n_tok_pad, H)
        pos_spec = pl.BlockSpec((T, H), lambda i, ids: (i, 0))
    else:
        # Resident: fetched once (constant block index), sliced in-kernel.
        pos_in = pos_emb[:S]                                   # (S, H)
        pos_spec = pl.BlockSpec((S, H), lambda i, ids: (0, 0))

    kernel = functools.partial(_bert_embed_kernel, T=T, Tc=Tc, C=C, S=S,
                               pos_mode=pos_mode, eps=eps)

    out = pl.pallas_call(
        kernel,
        out_shape=jax.ShapeDtypeStruct((n_tok_pad, H), jnp.float32),
        grid_spec=pltpu.PrefetchScalarGridSpec(
            num_scalar_prefetch=1,
            grid=(n_blocks,),
            in_specs=[
                pl.BlockSpec(memory_space=pl.ANY),              # word table (HBM)
                pos_spec,                                       # position rows
                pl.BlockSpec((1, H), lambda i, ids: (0, 0)),    # gamma
                pl.BlockSpec((1, H), lambda i, ids: (0, 0)),    # beta
            ],
            out_specs=pl.BlockSpec((T, H), lambda i, ids: (i, 0)),
            scratch_shapes=[
                pltpu.VMEM((2, Tc, H), word_emb.dtype),
                pltpu.SemaphoreType.DMA((2,)),
            ],
        ),
        compiler_params=pltpu.CompilerParams(
            # Blocks are fully self-contained (no carried scratch/semaphore
            # state), so the token-block axis can shard across TensorCores.
            dimension_semantics=("parallel",),
            vmem_limit_bytes=48 * 1024 * 1024,   # headroom, safe on v7x's 64 MiB
        ),
    )(ids, word_emb, pos_in, gamma.reshape(1, H), beta.reshape(1, H))

    return out[:n_tok].reshape(B, S, H)


def _reference(input_ids, word_emb, pos_emb, gamma, beta, eps=1e-12):
    B, S = input_ids.shape
    we = word_emb[input_ids]                       # (B, S, H)
    pe = pos_emb[jnp.arange(S)][None, :, :]        # (1, S, H)
    x = we + pe
    mean = jnp.mean(x, axis=-1, keepdims=True)
    var = jnp.mean(jnp.square(x - mean), axis=-1, keepdims=True)
    y = (x - mean) * lax.rsqrt(var + eps)
    return y * gamma + beta                        # dropout == identity (eval)


if __name__ == "__main__":
    # Small config consistent with the module.
    vocab_size = 64
    max_position_embeddings = 32
    hidden_dim = 128
    layer_norm_eps = 1e-12
    B, S = 2, 8

    key = jax.random.PRNGKey(0)
    k_ids, k_w, k_p, k_g, k_b = jax.random.split(key, 5)

    input_ids = jax.random.randint(k_ids, (B, S), 0, vocab_size, dtype=jnp.int32)
    word_emb = jax.random.normal(k_w, (vocab_size, hidden_dim), jnp.float32) * 0.02
    pos_emb = jax.random.normal(k_p, (max_position_embeddings, hidden_dim), jnp.float32) * 0.02
    gamma = 1.0 + 0.1 * jax.random.normal(k_g, (hidden_dim,), jnp.float32)
    beta = 0.1 * jax.random.normal(k_b, (hidden_dim,), jnp.float32)

    out = bert_embeddings(input_ids, word_emb, pos_emb, gamma, beta,
                          eps=layer_norm_eps)
    out = jax.block_until_ready(out)

    ref = _reference(input_ids, word_emb, pos_emb, gamma, beta, eps=layer_norm_eps)
    assert out.shape == (B, S, hidden_dim)
    assert jnp.allclose(out, ref, atol=1e-5, rtol=1e-5), "mismatch vs reference"

    print("KERNEL_OK")
</pallas_src>

<mosaic_0001>
module attributes {stable_mosaic.version = 11 : i64} {
  func.func @_bert_embed_kernel(%arg0: i32, %arg1: memref<16xi32, #tpu.memory_space<smem>>, %arg2: memref<64x128xf32, #tpu.memory_space<any>>, %arg3: memref<8x128xf32, #tpu.memory_space<vmem>>, %arg4: memref<1x128xf32, #tpu.memory_space<vmem>>, %arg5: memref<1x128xf32, #tpu.memory_space<vmem>>, %arg6: memref<16x128xf32, #tpu.memory_space<vmem>>, %arg7: memref<2x8x128xf32, #tpu.memory_space<vmem>>, %arg8: memref<2x!tpu.dma_semaphore, #tpu.memory_space<semaphore_mem>>) attributes {dimension_semantics = [#tpu.dimension_semantics<parallel>], iteration_bounds = array<i64: 1>, scalar_prefetch = 1 : i64, scratch_operands = 2 : i64, tpu.core_type = #tpu.core_type<tc>, window_params = [{}, {pipeline_mode = #tpu.pipeline_mode<synchronous>, transform_indices = @transform_1, window_bounds = array<i64: 8, 128>}, {pipeline_mode = #tpu.pipeline_mode<synchronous>, transform_indices = @transform_2, window_bounds = array<i64: 1, 128>}, {pipeline_mode = #tpu.pipeline_mode<synchronous>, transform_indices = @transform_3, window_bounds = array<i64: 1, 128>}, {transform_indices = @transform_4, window_bounds = array<i64: 16, 128>}]} {
    %c16_i32 = arith.constant 16 : i32
    %0 = arith.muli %arg0, %c16_i32 : i32
    %1 = tpu.assume_multiple %0, 16 : i32
    %c0 = arith.constant 0 : index
    %c0_0 = arith.constant 0 : index
    %2 = vector.load %arg4[%c0, %c0_0] : memref<1x128xf32, #tpu.memory_space<vmem>>, vector<1x128xf32>
    %c0_1 = arith.constant 0 : index
    %c0_2 = arith.constant 0 : index
    %3 = vector.load %arg5[%c0_1, %c0_2] : memref<1x128xf32, #tpu.memory_space<vmem>>, vector<1x128xf32>
    %c0_3 = arith.constant 0 : index
    %c0_4 = arith.constant 0 : index
    %4 = vector.load %arg3[%c0_3, %c0_4] : memref<8x128xf32, #tpu.memory_space<vmem>>, vector<8x128xf32>
    %c0_i32 = arith.constant 0 : i32
    %5 = arith.addi %1, %c0_i32 : i32
    %c0_i32_5 = arith.constant 0 : i32
    %6 = arith.addi %5, %c0_i32_5 : i32
    %7 = arith.index_cast %6 : i32 to index
    %8 = memref.load %arg1[%7] : memref<16xi32, #tpu.memory_space<smem>>
    %c0_i32_6 = arith.constant 0 : i32
    %c0_i32_7 = arith.constant 0 : i32
    %c0_i32_8 = arith.constant 0 : i32
    %9 = tpu.memref_slice %arg2[%8, %c0_i32_8] : memref<64x128xf32, #tpu.memory_space<any>> -> memref<1x128xf32, #tpu.memory_space<any>>
    %c0_i32_9 = arith.constant 0 : i32
    %c0_i32_10 = arith.constant 0 : i32
    %10 = tpu.memref_slice %arg7[%c0_i32_6, %c0_i32_9, %c0_i32_10] : memref<2x8x128xf32, #tpu.memory_space<vmem>> -> memref<1x1x128xf32, #tpu.memory_space<vmem>>
    %11 = tpu.memref_squeeze %10 : memref<1x1x128xf32, #tpu.memory_space<vmem>> -> memref<1x128xf32, #tpu.memory_space<vmem>>
    %12 = tpu.memref_slice %arg8[%c0_i32_7] : memref<2x!tpu.dma_semaphore, #tpu.memory_space<semaphore_mem>> -> memref<1x!tpu.dma_semaphore, #tpu.memory_space<semaphore_mem>>
    %13 = tpu.memref_squeeze %12 : memref<1x!tpu.dma_semaphore, #tpu.memory_space<semaphore_mem>> -> memref<!tpu.dma_semaphore, #tpu.memory_space<semaphore_mem>>
    tpu.enqueue_dma source(%9 : memref<1x128xf32, #tpu.memory_space<any>>) target(%11 : memref<1x128xf32, #tpu.memory_space<vmem>>) target_semaphore(%13 : memref<!tpu.dma_semaphore, #tpu.memory_space<semaphore_mem>>)
    %c1_i32 = arith.constant 1 : i32
    %14 = arith.addi %5, %c1_i32 : i32
    %15 = arith.index_cast %14 : i32 to index
    %16 = memref.load %arg1[%15] : memref<16xi32, #tpu.memory_space<smem>>
    %c0_i32_11 = arith.constant 0 : i32
    %c0_i32_12 = arith.constant 0 : i32
    %c0_i32_13 = arith.constant 0 : i32
    %17 = tpu.memref_slice %arg2[%16, %c0_i32_13] : memref<64x128xf32, #tpu.memory_space<any>> -> memref<1x128xf32, #tpu.memory_space<any>>
    %c1_i32_14 = arith.constant 1 : i32
    %c0_i32_15 = arith.constant 0 : i32
    %18 = tpu.memref_slice %arg7[%c0_i32_11, %c1_i32_14, %c0_i32_15] : memref<2x8x128xf32, #tpu.memory_space<vmem>> -> memref<1x1x128xf32, #tpu.memory_space<vmem>>
    %19 = tpu.memref_squeeze %18 : memref<1x1x128xf32, #tpu.memory_space<vmem>> -> memref<1x128xf32, #tpu.memory_space<vmem>>
    %20 = tpu.memref_slice %arg8[%c0_i32_12] : memref<2x!tpu.dma_semaphore, #tpu.memory_space<semaphore_mem>> -> memref<1x!tpu.dma_semaphore, #tpu.memory_space<semaphore_mem>>
    %21 = tpu.memref_squeeze %20 : memref<1x!tpu.dma_semaphore, #tpu.memory_space<semaphore_mem>> -> memref<!tpu.dma_semaphore, #tpu.memory_space<semaphore_mem>>
    tpu.enqueue_dma source(%17 : memref<1x128xf32, #tpu.memory_space<any>>) target(%19 : memref<1x128xf32, #tpu.memory_space<vmem>>) target_semaphore(%21 : memref<!tpu.dma_semaphore, #tpu.memory_space<semaphore_mem>>)
    %c2_i32 = arith.constant 2 : i32
    %22 = arith.addi %5, %c2_i32 : i32
    %23 = arith.index_cast %22 : i32 to index
    %24 = memref.load %arg1[%23] : memref<16xi32, #tpu.memory_space<smem>>
    %c0_i32_16 = arith.constant 0 : i32
    %c0_i32_17 = arith.constant 0 : i32
    %c0_i32_18 = arith.constant 0 : i32
    %25 = tpu.memref_slice %arg2[%24, %c0_i32_18] : memref<64x128xf32, #tpu.memory_space<any>> -> memref<1x128xf32, #tpu.memory_space<any>>
    %c2_i32_19 = arith.constant 2 : i32
    %c0_i32_20 = arith.constant 0 : i32
    %26 = tpu.memref_slice %arg7[%c0_i32_16, %c2_i32_19, %c0_i32_20] : memref<2x8x128xf32, #tpu.memory_space<vmem>> -> memref<1x1x128xf32, #tpu.memory_space<vmem>>
    %27 = tpu.memref_squeeze %26 : memref<1x1x128xf32, #tpu.memory_space<vmem>> -> memref<1x128xf32, #tpu.memory_space<vmem>>
    %28 = tpu.memref_slice %arg8[%c0_i32_17] : memref<2x!tpu.dma_semaphore, #tpu.memory_space<semaphore_mem>> -> memref<1x!tpu.dma_semaphore, #tpu.memory_space<semaphore_mem>>
    %29 = tpu.memref_squeeze %28 : memref<1x!tpu.dma_semaphore, #tpu.memory_space<semaphore_mem>> -> memref<!tpu.dma_semaphore, #tpu.memory_space<semaphore_mem>>
    tpu.enqueue_dma source(%25 : memref<1x128xf32, #tpu.memory_space<any>>) target(%27 : memref<1x128xf32, #tpu.memory_space<vmem>>) target_semaphore(%29 : memref<!tpu.dma_semaphore, #tpu.memory_space<semaphore_mem>>)
    %c3_i32 = arith.constant 3 : i32
    %30 = arith.addi %5, %c3_i32 : i32
    %31 = arith.index_cast %30 : i32 to index
    %32 = memref.load %arg1[%31] : memref<16xi32, #tpu.memory_space<smem>>
    %c0_i32_21 = arith.constant 0 : i32
    %c0_i32_22 = arith.constant 0 : i32
    %c0_i32_23 = arith.constant 0 : i32
    %33 = tpu.memref_slice %arg2[%32, %c0_i32_23] : memref<64x128xf32, #tpu.memory_space<any>> -> memref<1x128xf32, #tpu.memory_space<any>>
    %c3_i32_24 = arith.constant 3 : i32
    %c0_i32_25 = arith.constant 0 : i32
    %34 = tpu.memref_slice %arg7[%c0_i32_21, %c3_i32_24, %c0_i32_25] : memref<2x8x128xf32, #tpu.memory_space<vmem>> -> memref<1x1x128xf32, #tpu.memory_space<vmem>>
    %35 = tpu.memref_squeeze %34 : memref<1x1x128xf32, #tpu.memory_space<vmem>> -> memref<1x128xf32, #tpu.memory_space<vmem>>
    %36 = tpu.memref_slice %arg8[%c0_i32_22] : memref<2x!tpu.dma_semaphore, #tpu.memory_space<semaphore_mem>> -> memref<1x!tpu.dma_semaphore, #tpu.memory_space<semaphore_mem>>
    %37 = tpu.memref_squeeze %36 : memref<1x!tpu.dma_semaphore, #tpu.memory_space<semaphore_mem>> -> memref<!tpu.dma_semaphore, #tpu.memory_space<semaphore_mem>>
    tpu.enqueue_dma source(%33 : memref<1x128xf32, #tpu.memory_space<any>>) target(%35 : memref<1x128xf32, #tpu.memory_space<vmem>>) target_semaphore(%37 : memref<!tpu.dma_semaphore, #tpu.memory_space<semaphore_mem>>)
    %c4_i32 = arith.constant 4 : i32
    %38 = arith.addi %5, %c4_i32 : i32
    %39 = arith.index_cast %38 : i32 to index
    %40 = memref.load %arg1[%39] : memref<16xi32, #tpu.memory_space<smem>>
    %c0_i32_26 = arith.constant 0 : i32
    %c0_i32_27 = arith.constant 0 : i32
    %c0_i32_28 = arith.constant 0 : i32
    %41 = tpu.memref_slice %arg2[%40, %c0_i32_28] : memref<64x128xf32, #tpu.memory_space<any>> -> memref<1x128xf32, #tpu.memory_space<any>>
    %c4_i32_29 = arith.constant 4 : i32
    %c0_i32_30 = arith.constant 0 : i32
    %42 = tpu.memref_slice %arg7[%c0_i32_26, %c4_i32_29, %c0_i32_30] : memref<2x8x128xf32, #tpu.memory_space<vmem>> -> memref<1x1x128xf32, #tpu.memory_space<vmem>>
    %43 = tpu.memref_squeeze %42 : memref<1x1x128xf32, #tpu.memory_space<vmem>> -> memref<1x128xf32, #tpu.memory_space<vmem>>
    %44 = tpu.memref_slice %arg8[%c0_i32_27] : memref<2x!tpu.dma_semaphore, #tpu.memory_space<semaphore_mem>> -> memref<1x!tpu.dma_semaphore, #tpu.memory_space<semaphore_mem>>
    %45 = tpu.memref_squeeze %44 : memref<1x!tpu.dma_semaphore, #tpu.memory_space<semaphore_mem>> -> memref<!tpu.dma_semaphore, #tpu.memory_space<semaphore_mem>>
    tpu.enqueue_dma source(%41 : memref<1x128xf32, #tpu.memory_space<any>>) target(%43 : memref<1x128xf32, #tpu.memory_space<vmem>>) target_semaphore(%45 : memref<!tpu.dma_semaphore, #tpu.memory_space<semaphore_mem>>)
    %c5_i32 = arith.constant 5 : i32
    %46 = arith.addi %5, %c5_i32 : i32
    %47 = arith.index_cast %46 : i32 to index
    %48 = memref.load %arg1[%47] : memref<16xi32, #tpu.memory_space<smem>>
    %c0_i32_31 = arith.constant 0 : i32
    %c0_i32_32 = arith.constant 0 : i32
    %c0_i32_33 = arith.constant 0 : i32
    %49 = tpu.memref_slice %arg2[%48, %c0_i32_33] : memref<64x128xf32, #tpu.memory_space<any>> -> memref<1x128xf32, #tpu.memory_space<any>>
    %c5_i32_34 = arith.constant 5 : i32
    %c0_i32_35 = arith.constant 0 : i32
    %50 = tpu.memref_slice %arg7[%c0_i32_31, %c5_i32_34, %c0_i32_35] : memref<2x8x128xf32, #tpu.memory_space<vmem>> -> memref<1x1x128xf32, #tpu.memory_space<vmem>>
    %51 = tpu.memref_squeeze %50 : memref<1x1x128xf32, #tpu.memory_space<vmem>> -> memref<1x128xf32, #tpu.memory_space<vmem>>
    %52 = tpu.memref_slice %arg8[%c0_i32_32] : memref<2x!tpu.dma_semaphore, #tpu.memory_space<semaphore_mem>> -> memref<1x!tpu.dma_semaphore, #tpu.memory_space<semaphore_mem>>
    %53 = tpu.memref_squeeze %52 : memref<1x!tpu.dma_semaphore, #tpu.memory_space<semaphore_mem>> -> memref<!tpu.dma_semaphore, #tpu.memory_space<semaphore_mem>>
    tpu.enqueue_dma source(%49 : memref<1x128xf32, #tpu.memory_space<any>>) target(%51 : memref<1x128xf32, #tpu.memory_space<vmem>>) target_semaphore(%53 : memref<!tpu.dma_semaphore, #tpu.memory_space<semaphore_mem>>)
    %c6_i32 = arith.constant 6 : i32
    %54 = arith.addi %5, %c6_i32 : i32
    %55 = arith.index_cast %54 : i32 to index
    %56 = memref.load %arg1[%55] : memref<16xi32, #tpu.memory_space<smem>>
    %c0_i32_36 = arith.constant 0 : i32
    %c0_i32_37 = arith.constant 0 : i32
    %c0_i32_38 = arith.constant 0 : i32
    %57 = tpu.memref_slice %arg2[%56, %c0_i32_38] : memref<64x128xf32, #tpu.memory_space<any>> -> memref<1x128xf32, #tpu.memory_space<any>>
    %c6_i32_39 = arith.constant 6 : i32
    %c0_i32_40 = arith.constant 0 : i32
    %58 = tpu.memref_slice %arg7[%c0_i32_36, %c6_i32_39, %c0_i32_40] : memref<2x8x128xf32, #tpu.memory_space<vmem>> -> memref<1x1x128xf32, #tpu.memory_space<vmem>>
    %59 = tpu.memref_squeeze %58 : memref<1x1x128xf32, #tpu.memory_space<vmem>> -> memref<1x128xf32, #tpu.memory_space<vmem>>
    %60 = tpu.memref_slice %arg8[%c0_i32_37] : memref<2x!tpu.dma_semaphore, #tpu.memory_space<semaphore_mem>> -> memref<1x!tpu.dma_semaphore, #tpu.memory_space<semaphore_mem>>
    %61 = tpu.memref_squeeze %60 : memref<1x!tpu.dma_semaphore, #tpu.memory_space<semaphore_mem>> -> memref<!tpu.dma_semaphore, #tpu.memory_space<semaphore_mem>>
    tpu.enqueue_dma source(%57 : memref<1x128xf32, #tpu.memory_space<any>>) target(%59 : memref<1x128xf32, #tpu.memory_space<vmem>>) target_semaphore(%61 : memref<!tpu.dma_semaphore, #tpu.memory_space<semaphore_mem>>)
    %c7_i32 = arith.constant 7 : i32
    %62 = arith.addi %5, %c7_i32 : i32
    %63 = arith.index_cast %62 : i32 to index
    %64 = memref.load %arg1[%63] : memref<16xi32, #tpu.memory_space<smem>>
    %c0_i32_41 = arith.constant 0 : i32
    %c0_i32_42 = arith.constant 0 : i32
    %c0_i32_43 = arith.constant 0 : i32
    %65 = tpu.memref_slice %arg2[%64, %c0_i32_43] : memref<64x128xf32, #tpu.memory_space<any>> -> memref<1x128xf32, #tpu.memory_space<any>>
    %c7_i32_44 = arith.constant 7 : i32
    %c0_i32_45 = arith.constant 0 : i32
    %66 = tpu.memref_slice %arg7[%c0_i32_41, %c7_i32_44, %c0_i32_45] : memref<2x8x128xf32, #tpu.memory_space<vmem>> -> memref<1x1x128xf32, #tpu.memory_space<vmem>>
    %67 = tpu.memref_squeeze %66 : memref<1x1x128xf32, #tpu.memory_space<vmem>> -> memref<1x128xf32, #tpu.memory_space<vmem>>
    %68 = tpu.memref_slice %arg8[%c0_i32_42] : memref<2x!tpu.dma_semaphore, #tpu.memory_space<semaphore_mem>> -> memref<1x!tpu.dma_semaphore, #tpu.memory_space<semaphore_mem>>
    %69 = tpu.memref_squeeze %68 : memref<1x!tpu.dma_semaphore, #tpu.memory_space<semaphore_mem>> -> memref<!tpu.dma_semaphore, #tpu.memory_space<semaphore_mem>>
    tpu.enqueue_dma source(%65 : memref<1x128xf32, #tpu.memory_space<any>>) target(%67 : memref<1x128xf32, #tpu.memory_space<vmem>>) target_semaphore(%69 : memref<!tpu.dma_semaphore, #tpu.memory_space<semaphore_mem>>)
    %c8_i32 = arith.constant 8 : i32
    %70 = arith.addi %1, %c8_i32 : i32
    %c0_i32_46 = arith.constant 0 : i32
    %71 = arith.addi %70, %c0_i32_46 : i32
    %72 = arith.index_cast %71 : i32 to index
    %73 = memref.load %arg1[%72] : memref<16xi32, #tpu.memory_space<smem>>
    %c1_i32_47 = arith.constant 1 : i32
    %c1_i32_48 = arith.constant 1 : i32
    %c0_i32_49 = arith.constant 0 : i32
    %74 = tpu.memref_slice %arg2[%73, %c0_i32_49] : memref<64x128xf32, #tpu.memory_space<any>> -> memref<1x128xf32, #tpu.memory_space<any>>
    %c0_i32_50 = arith.constant 0 : i32
    %c0_i32_51 = arith.constant 0 : i32
    %75 = tpu.memref_slice %arg7[%c1_i32_47, %c0_i32_50, %c0_i32_51] : memref<2x8x128xf32, #tpu.memory_space<vmem>> -> memref<1x1x128xf32, #tpu.memory_space<vmem>>
    %76 = tpu.memref_squeeze %75 : memref<1x1x128xf32, #tpu.memory_space<vmem>> -> memref<1x128xf32, #tpu.memory_space<vmem>>
    %77 = tpu.memref_slice %arg8[%c1_i32_48] : memref<2x!tpu.dma_semaphore, #tpu.memory_space<semaphore_mem>> -> memref<1x!tpu.dma_semaphore, #tpu.memory_space<semaphore_mem>>
    %78 = tpu.memref_squeeze %77 : memref<1x!tpu.dma_semaphore, #tpu.memory_space<semaphore_mem>> -> memref<!tpu.dma_semaphore, #tpu.memory_space<semaphore_mem>>
    tpu.enqueue_dma source(%74 : memref<1x128xf32, #tpu.memory_space<any>>) target(%76 : memref<1x128xf32, #tpu.memory_space<vmem>>) target_semaphore(%78 : memref<!tpu.dma_semaphore, #tpu.memory_space<semaphore_mem>>)
    %c1_i32_52 = arith.constant 1 : i32
    %79 = arith.addi %70, %c1_i32_52 : i32
    %80 = arith.index_cast %79 : i32 to index
    %81 = memref.load %arg1[%80] : memref<16xi32, #tpu.memory_space<smem>>
    %c1_i32_53 = arith.constant 1 : i32
    %c1_i32_54 = arith.constant 1 : i32
    %c0_i32_55 = arith.constant 0 : i32
    %82 = tpu.memref_slice %arg2[%81, %c0_i32_55] : memref<64x128xf32, #tpu.memory_space<any>> -> memref<1x128xf32, #tpu.memory_space<any>>
    %c1_i32_56 = arith.constant 1 : i32
    %c0_i32_57 = arith.constant 0 : i32
    %83 = tpu.memref_slice %arg7[%c1_i32_53, %c1_i32_56, %c0_i32_57] : memref<2x8x128xf32, #tpu.memory_space<vmem>> -> memref<1x1x128xf32, #tpu.memory_space<vmem>>
    %84 = tpu.memref_squeeze %83 : memref<1x1x128xf32, #tpu.memory_space<vmem>> -> memref<1x128xf32, #tpu.memory_space<vmem>>
    %85 = tpu.memref_slice %arg8[%c1_i32_54] : memref<2x!tpu.dma_semaphore, #tpu.memory_space<semaphore_mem>> -> memref<1x!tpu.dma_semaphore, #tpu.memory_space<semaphore_mem>>
    %86 = tpu.memref_squeeze %85 : memref<1x!tpu.dma_semaphore, #tpu.memory_space<semaphore_mem>> -> memref<!tpu.dma_semaphore, #tpu.memory_space<semaphore_mem>>
    tpu.enqueue_dma source(%82 : memref<1x128xf32, #tpu.memory_space<any>>) target(%84 : memref<1x128xf32, #tpu.memory_space<vmem>>) target_semaphore(%86 : memref<!tpu.dma_semaphore, #tpu.memory_space<semaphore_mem>>)
    %c2_i32_58 = arith.constant 2 : i32
    %87 = arith.addi %70, %c2_i32_58 : i32
    %88 = arith.index_cast %87 : i32 to index
    %89 = memref.load %arg1[%88] : memref<16xi32, #tpu.memory_space<smem>>
    %c1_i32_59 = arith.constant 1 : i32
    %c1_i32_60 = arith.constant 1 : i32
    %c0_i32_61 = arith.constant 0 : i32
    %90 = tpu.memref_slice %arg2[%89, %c0_i32_61] : memref<64x128xf32, #tpu.memory_space<any>> -> memref<1x128xf32, #tpu.memory_space<any>>
    %c2_i32_62 = arith.constant 2 : i32
    %c0_i32_63 = arith.constant 0 : i32
    %91 = tpu.memref_slice %arg7[%c1_i32_59, %c2_i32_62, %c0_i32_63] : memref<2x8x128xf32, #tpu.memory_space<vmem>> -> memref<1x1x128xf32, #tpu.memory_space<vmem>>
    %92 = tpu.memref_squeeze %91 : memref<1x1x128xf32, #tpu.memory_space<vmem>> -> memref<1x128xf32, #tpu.memory_space<vmem>>
    %93 = tpu.memref_slice %arg8[%c1_i32_60] : memref<2x!tpu.dma_semaphore, #tpu.memory_space<semaphore_mem>> -> memref<1x!tpu.dma_semaphore, #tpu.memory_space<semaphore_mem>>
    %94 = tpu.memref_squeeze %93 : memref<1x!tpu.dma_semaphore, #tpu.memory_space<semaphore_mem>> -> memref<!tpu.dma_semaphore, #tpu.memory_space<semaphore_mem>>
    tpu.enqueue_dma source(%90 : memref<1x128xf32, #tpu.memory_space<any>>) target(%92 : memref<1x128xf32, #tpu.memory_space<vmem>>) target_semaphore(%94 : memref<!tpu.dma_semaphore, #tpu.memory_space<semaphore_mem>>)
    %c3_i32_64 = arith.constant 3 : i32
    %95 = arith.addi %70, %c3_i32_64 : i32
    %96 = arith.index_cast %95 : i32 to index
    %97 = memref.load %arg1[%96] : memref<16xi32, #tpu.memory_space<smem>>
    %c1_i32_65 = arith.constant 1 : i32
    %c1_i32_66 = arith.constant 1 : i32
    %c0_i32_67 = arith.constant 0 : i32
    %98 = tpu.memref_slice %arg2[%97, %c0_i32_67] : memref<64x128xf32, #tpu.memory_space<any>> -> memref<1x128xf32, #tpu.memory_space<any>>
    %c3_i32_68 = arith.constant 3 : i32
    %c0_i32_69 = arith.constant 0 : i32
    %99 = tpu.memref_slice %arg7[%c1_i32_65, %c3_i32_68, %c0_i32_69] : memref<2x8x128xf32, #tpu.memory_space<vmem>> -> memref<1x1x128xf32, #tpu.memory_space<vmem>>
    %100 = tpu.memref_squeeze %99 : memref<1x1x128xf32, #tpu.memory_space<vmem>> -> memref<1x128xf32, #tpu.memory_space<vmem>>
    %101 = tpu.memref_slice %arg8[%c1_i32_66] : memref<2x!tpu.dma_semaphore, #tpu.memory_space<semaphore_mem>> -> memref<1x!tpu.dma_semaphore, #tpu.memory_space<semaphore_mem>>
    %102 = tpu.memref_squeeze %101 : memref<1x!tpu.dma_semaphore, #tpu.memory_space<semaphore_mem>> -> memref<!tpu.dma_semaphore, #tpu.memory_space<semaphore_mem>>
    tpu.enqueue_dma source(%98 : memref<1x128xf32, #tpu.memory_space<any>>) target(%100 : memref<1x128xf32, #tpu.memory_space<vmem>>) target_semaphore(%102 : memref<!tpu.dma_semaphore, #tpu.memory_space<semaphore_mem>>)
    %c4_i32_70 = arith.constant 4 : i32
    %103 = arith.addi %70, %c4_i32_70 : i32
    %104 = arith.index_cast %103 : i32 to index
    %105 = memref.load %arg1[%104] : memref<16xi32, #tpu.memory_space<smem>>
    %c1_i32_71 = arith.constant 1 : i32
    %c1_i32_72 = arith.constant 1 : i32
    %c0_i32_73 = arith.constant 0 : i32
    %106 = tpu.memref_slice %arg2[%105, %c0_i32_73] : memref<64x128xf32, #tpu.memory_space<any>> -> memref<1x128xf32, #tpu.memory_space<any>>
    %c4_i32_74 = arith.constant 4 : i32
    %c0_i32_75 = arith.constant 0 : i32
    %107 = tpu.memref_slice %arg7[%c1_i32_71, %c4_i32_74, %c0_i32_75] : memref<2x8x128xf32, #tpu.memory_space<vmem>> -> memref<1x1x128xf32, #tpu.memory_space<vmem>>
    %108 = tpu.memref_squeeze %107 : memref<1x1x128xf32, #tpu.memory_space<vmem>> -> memref<1x128xf32, #tpu.memory_space<vmem>>
    %109 = tpu.memref_slice %arg8[%c1_i32_72] : memref<2x!tpu.dma_semaphore, #tpu.memory_space<semaphore_mem>> -> memref<1x!tpu.dma_semaphore, #tpu.memory_space<semaphore_mem>>
    %110 = tpu.memref_squeeze %109 : memref<1x!tpu.dma_semaphore, #tpu.memory_space<semaphore_mem>> -> memref<!tpu.dma_semaphore, #tpu.memory_space<semaphore_mem>>
    tpu.enqueue_dma source(%106 : memref<1x128xf32, #tpu.memory_space<any>>) target(%108 : memref<1x128xf32, #tpu.memory_space<vmem>>) target_semaphore(%110 : memref<!tpu.dma_semaphore, #tpu.memory_space<semaphore_mem>>)
    %c5_i32_76 = arith.constant 5 : i32
    %111 = arith.addi %70, %c5_i32_76 : i32
    %112 = arith.index_cast %111 : i32 to index
    %113 = memref.load %arg1[%112] : memref<16xi32, #tpu.memory_space<smem>>
    %c1_i32_77 = arith.constant 1 : i32
    %c1_i32_78 = arith.constant 1 : i32
    %c0_i32_79 = arith.constant 0 : i32
    %114 = tpu.memref_slice %arg2[%113, %c0_i32_79] : memref<64x128xf32, #tpu.memory_space<any>> -> memref<1x128xf32, #tpu.memory_space<any>>
    %c5_i32_80 = arith.constant 5 : i32
    %c0_i32_81 = arith.constant 0 : i32
    %115 = tpu.memref_slice %arg7[%c1_i32_77, %c5_i32_80, %c0_i32_81] : memref<2x8x128xf32, #tpu.memory_space<vmem>> -> memref<1x1x128xf32, #tpu.memory_space<vmem>>
    %116 = tpu.memref_squeeze %115 : memref<1x1x128xf32, #tpu.memory_space<vmem>> -> memref<1x128xf32, #tpu.memory_space<vmem>>
    %117 = tpu.memref_slice %arg8[%c1_i32_78] : memref<2x!tpu.dma_semaphore, #tpu.memory_space<semaphore_mem>> -> memref<1x!tpu.dma_semaphore, #tpu.memory_space<semaphore_mem>>
    %118 = tpu.memref_squeeze %117 : memref<1x!tpu.dma_semaphore, #tpu.memory_space<semaphore_mem>> -> memref<!tpu.dma_semaphore, #tpu.memory_space<semaphore_mem>>
    tpu.enqueue_dma source(%114 : memref<1x128xf32, #tpu.memory_space<any>>) target(%116 : memref<1x128xf32, #tpu.memory_space<vmem>>) target_semaphore(%118 : memref<!tpu.dma_semaphore, #tpu.memory_space<semaphore_mem>>)
    %c6_i32_82 = arith.constant 6 : i32
    %119 = arith.addi %70, %c6_i32_82 : i32
    %120 = arith.index_cast %119 : i32 to index
    %121 = memref.load %arg1[%120] : memref<16xi32, #tpu.memory_space<smem>>
    %c1_i32_83 = arith.constant 1 : i32
    %c1_i32_84 = arith.constant 1 : i32
    %c0_i32_85 = arith.constant 0 : i32
    %122 = tpu.memref_slice %arg2[%121, %c0_i32_85] : memref<64x128xf32, #tpu.memory_space<any>> -> memref<1x128xf32, #tpu.memory_space<any>>
    %c6_i32_86 = arith.constant 6 : i32
    %c0_i32_87 = arith.constant 0 : i32
    %123 = tpu.memref_slice %arg7[%c1_i32_83, %c6_i32_86, %c0_i32_87] : memref<2x8x128xf32, #tpu.memory_space<vmem>> -> memref<1x1x128xf32, #tpu.memory_space<vmem>>
    %124 = tpu.memref_squeeze %123 : memref<1x1x128xf32, #tpu.memory_space<vmem>> -> memref<1x128xf32, #tpu.memory_space<vmem>>
    %125 = tpu.memref_slice %arg8[%c1_i32_84] : memref<2x!tpu.dma_semaphore, #tpu.memory_space<semaphore_mem>> -> memref<1x!tpu.dma_semaphore, #tpu.memory_space<semaphore_mem>>
    %126 = tpu.memref_squeeze %125 : memref<1x!tpu.dma_semaphore, #tpu.memory_space<semaphore_mem>> -> memref<!tpu.dma_semaphore, #tpu.memory_space<semaphore_mem>>
    tpu.enqueue_dma source(%122 : memref<1x128xf32, #tpu.memory_space<any>>) target(%124 : memref<1x128xf32, #tpu.memory_space<vmem>>) target_semaphore(%126 : memref<!tpu.dma_semaphore, #tpu.memory_space<semaphore_mem>>)
    %c7_i32_88 = arith.constant 7 : i32
    %127 = arith.addi %70, %c7_i32_88 : i32
    %128 = arith.index_cast %127 : i32 to index
    %129 = memref.load %arg1[%128] : memref<16xi32, #tpu.memory_space<smem>>
    %c1_i32_89 = arith.constant 1 : i32
    %c1_i32_90 = arith.constant 1 : i32
    %c0_i32_91 = arith.constant 0 : i32
    %130 = tpu.memref_slice %arg2[%129, %c0_i32_91] : memref<64x128xf32, #tpu.memory_space<any>> -> memref<1x128xf32, #tpu.memory_space<any>>
    %c7_i32_92 = arith.constant 7 : i32
    %c0_i32_93 = arith.constant 0 : i32
    %131 = tpu.memref_slice %arg7[%c1_i32_89, %c7_i32_92, %c0_i32_93] : memref<2x8x128xf32, #tpu.memory_space<vmem>> -> memref<1x1x128xf32, #tpu.memory_space<vmem>>
    %132 = tpu.memref_squeeze %131 : memref<1x1x128xf32, #tpu.memory_space<vmem>> -> memref<1x128xf32, #tpu.memory_space<vmem>>
    %133 = tpu.memref_slice %arg8[%c1_i32_90] : memref<2x!tpu.dma_semaphore, #tpu.memory_space<semaphore_mem>> -> memref<1x!tpu.dma_semaphore, #tpu.memory_space<semaphore_mem>>
    %134 = tpu.memref_squeeze %133 : memref<1x!tpu.dma_semaphore, #tpu.memory_space<semaphore_mem>> -> memref<!tpu.dma_semaphore, #tpu.memory_space<semaphore_mem>>
    tpu.enqueue_dma source(%130 : memref<1x128xf32, #tpu.memory_space<any>>) target(%132 : memref<1x128xf32, #tpu.memory_space<vmem>>) target_semaphore(%134 : memref<!tpu.dma_semaphore, #tpu.memory_space<semaphore_mem>>)
    %c0_i32_94 = arith.constant 0 : i32
    %c0_i32_95 = arith.constant 0 : i32
    %c0_i32_96 = arith.constant 0 : i32
    %c0_i32_97 = arith.constant 0 : i32
    %135 = tpu.memref_slice %arg2[%c0_i32_96, %c0_i32_97] : memref<64x128xf32, #tpu.memory_space<any>> -> memref<8x128xf32, #tpu.memory_space<any>>
    %c0_i32_98 = arith.constant 0 : i32
    %c0_i32_99 = arith.constant 0 : i32
    %136 = tpu.memref_slice %arg7[%c0_i32_94, %c0_i32_98, %c0_i32_99] : memref<2x8x128xf32, #tpu.memory_space<vmem>> -> memref<1x8x128xf32, #tpu.memory_space<vmem>>
    %137 = tpu.memref_squeeze %136 : memref<1x8x128xf32, #tpu.memory_space<vmem>> -> memref<8x128xf32, #tpu.memory_space<vmem>>
    %138 = tpu.memref_slice %arg8[%c0_i32_95] : memref<2x!tpu.dma_semaphore, #tpu.memory_space<semaphore_mem>> -> memref<1x!tpu.dma_semaphore, #tpu.memory_space<semaphore_mem>>
    %139 = tpu.memref_squeeze %138 : memref<1x!tpu.dma_semaphore, #tpu.memory_space<semaphore_mem>> -> memref<!tpu.dma_semaphore, #tpu.memory_space<semaphore_mem>>
    tpu.wait_dma2 semaphore(%139 : memref<!tpu.dma_semaphore, #tpu.memory_space<semaphore_mem>>) src(%135 : memref<8x128xf32, #tpu.memory_space<any>>) dst(%137 : memref<8x128xf32, #tpu.memory_space<vmem>>)
    %c0_100 = arith.constant 0 : index
    %c0_101 = arith.constant 0 : index
    %c0_102 = arith.constant 0 : index
    %140 = vector.load %arg7[%c0_100, %c0_101, %c0_102] : memref<2x8x128xf32, #tpu.memory_space<vmem>>, vector<1x8x128xf32>
    %141 = vector.shape_cast %140 : vector<1x8x128xf32> to vector<8x128xf32>
    %142 = arith.addf %141, %4 : vector<8x128xf32>
    %cst = arith.constant dense<0.000000e+00> : vector<8xf32>
    %143 = vector.multi_reduction <add>, %142, %cst [1] : vector<8x128xf32> to vector<8xf32>
    %144 = vector.shape_cast %143 : vector<8xf32> to vector<8x1xf32>
    %cst_103 = arith.constant 1.280000e+02 : f32
    %145 = vector.broadcast %cst_103 : f32 to vector<8x1xf32>
    %146 = arith.divf %144, %145 : vector<8x1xf32>
    %147 = vector.broadcast %146 : vector<8x1xf32> to vector<8x128xf32>
    %148 = arith.subf %142, %147 : vector<8x128xf32>
    %149 = arith.mulf %148, %148 : vector<8x128xf32>
    %cst_104 = arith.constant dense<0.000000e+00> : vector<8xf32>
    %150 = vector.multi_reduction <add>, %149, %cst_104 [1] : vector<8x128xf32> to vector<8xf32>
    %151 = vector.shape_cast %150 : vector<8xf32> to vector<8x1xf32>
    %cst_105 = arith.constant 1.280000e+02 : f32
    %152 = vector.broadcast %cst_105 : f32 to vector<8x1xf32>
    %153 = arith.divf %151, %152 : vector<8x1xf32>
    %154 = vector.broadcast %146 : vector<8x1xf32> to vector<8x128xf32>
    %155 = arith.subf %142, %154 : vector<8x128xf32>
    %cst_106 = arith.constant 9.99999996E-13 : f32
    %156 = vector.broadcast %cst_106 : f32 to vector<8x1xf32>
    %157 = arith.addf %153, %156 : vector<8x1xf32>
    %158 = math.rsqrt %157 : vector<8x1xf32>
    %159 = vector.broadcast %158 : vector<8x1xf32> to vector<8x128xf32>
    %160 = arith.mulf %155, %159 : vector<8x128xf32>
    %161 = vector.broadcast %2 : vector<1x128xf32> to vector<8x128xf32>
    %162 = arith.mulf %160, %161 : vector<8x128xf32>
    %163 = vector.broadcast %3 : vector<1x128xf32> to vector<8x128xf32>
    %164 = arith.addf %162, %163 : vector<8x128xf32>
    %c0_107 = arith.constant 0 : index
    %c0_108 = arith.constant 0 : index
    %165 = vector.load %arg6[%c0_107, %c0_108] : memref<16x128xf32, #tpu.memory_space<vmem>>, vector<8x128xf32>
    tpu.vector_store %arg6[%c0_107, %c0_108], %164 {strides = array<i32>} : memref<16x128xf32, #tpu.memory_space<vmem>>, vector<8x128xf32>,
    %c1_i32_109 = arith.constant 1 : i32
    %c1_i32_110 = arith.constant 1 : i32
    %c0_i32_111 = arith.constant 0 : i32
    %c0_i32_112 = arith.constant 0 : i32
    %166 = tpu.memref_slice %arg2[%c0_i32_111, %c0_i32_112] : memref<64x128xf32, #tpu.memory_space<any>> -> memref<8x128xf32, #tpu.memory_space<any>>
    %c0_i32_113 = arith.constant 0 : i32
    %c0_i32_114 = arith.constant 0 : i32
    %167 = tpu.memref_slice %arg7[%c1_i32_109, %c0_i32_113, %c0_i32_114] : memref<2x8x128xf32, #tpu.memory_space<vmem>> -> memref<1x8x128xf32, #tpu.memory_space<vmem>>
    %168 = tpu.memref_squeeze %167 : memref<1x8x128xf32, #tpu.memory_space<vmem>> -> memref<8x128xf32, #tpu.memory_space<vmem>>
    %169 = tpu.memref_slice %arg8[%c1_i32_110] : memref<2x!tpu.dma_semaphore, #tpu.memory_space<semaphore_mem>> -> memref<1x!tpu.dma_semaphore, #tpu.memory_space<semaphore_mem>>
    %170 = tpu.memref_squeeze %169 : memref<1x!tpu.dma_semaphore, #tpu.memory_space<semaphore_mem>> -> memref<!tpu.dma_semaphore, #tpu.memory_space<semaphore_mem>>
    tpu.wait_dma2 semaphore(%170 : memref<!tpu.dma_semaphore, #tpu.memory_space<semaphore_mem>>) src(%166 : memref<8x128xf32, #tpu.memory_space<any>>) dst(%168 : memref<8x128xf32, #tpu.memory_space<vmem>>)
    %c1 = arith.constant 1 : index
    %c0_115 = arith.constant 0 : index
    %c0_116 = arith.constant 0 : index
    %171 = vector.load %arg7[%c1, %c0_115, %c0_116] : memref<2x8x128xf32, #tpu.memory_space<vmem>>, vector<1x8x128xf32>
    %172 = vector.shape_cast %171 : vector<1x8x128xf32> to vector<8x128xf32>
    %173 = arith.addf %172, %4 : vector<8x128xf32>
    %cst_117 = arith.constant dense<0.000000e+00> : vector<8xf32>
    %174 = vector.multi_reduction <add>, %173, %cst_117 [1] : vector<8x128xf32> to vector<8xf32>
    %175 = vector.shape_cast %174 : vector<8xf32> to vector<8x1xf32>
    %cst_118 = arith.constant 1.280000e+02 : f32
    %176 = vector.broadcast %cst_118 : f32 to vector<8x1xf32>
    %177 = arith.divf %175, %176 : vector<8x1xf32>
    %178 = vector.broadcast %177 : vector<8x1xf32> to vector<8x128xf32>
    %179 = arith.subf %173, %178 : vector<8x128xf32>
    %180 = arith.mulf %179, %179 : vector<8x128xf32>
    %cst_119 = arith.constant dense<0.000000e+00> : vector<8xf32>
    %181 = vector.multi_reduction <add>, %180, %cst_119 [1] : vector<8x128xf32> to vector<8xf32>
    %182 = vector.shape_cast %181 : vector<8xf32> to vector<8x1xf32>
    %cst_120 = arith.constant 1.280000e+02 : f32
    %183 = vector.broadcast %cst_120 : f32 to vector<8x1xf32>
    %184 = arith.divf %182, %183 : vector<8x1xf32>
    %185 = vector.broadcast %177 : vector<8x1xf32> to vector<8x128xf32>
    %186 = arith.subf %173, %185 : vector<8x128xf32>
    %cst_121 = arith.constant 9.99999996E-13 : f32
    %187 = vector.broadcast %cst_121 : f32 to vector<8x1xf32>
    %188 = arith.addf %184, %187 : vector<8x1xf32>
    %189 = math.rsqrt %188 : vector<8x1xf32>
    %190 = vector.broadcast %189 : vector<8x1xf32> to vector<8x128xf32>
    %191 = arith.mulf %186, %190 : vector<8x128xf32>
    %192 = vector.broadcast %2 : vector<1x128xf32> to vector<8x128xf32>
    %193 = arith.mulf %191, %192 : vector<8x128xf32>
    %194 = vector.broadcast %3 : vector<1x128xf32> to vector<8x128xf32>
    %195 = arith.addf %193, %194 : vector<8x128xf32>
    %c8 = arith.constant 8 : index
    %c0_122 = arith.constant 0 : index
    %196 = vector.load %arg6[%c8, %c0_122] : memref<16x128xf32, #tpu.memory_space<vmem>>, vector<8x128xf32>
    tpu.vector_store %arg6[%c8, %c0_122], %195 {strides = array<i32>} : memref<16x128xf32, #tpu.memory_space<vmem>>, vector<8x128xf32>,
    return
  }
  func.func @transform_1(%arg0: i32, %arg1: memref<16xi32, #tpu.memory_space<smem>>) -> (i32, i32) {
    %c0_i32 = arith.constant 0 : i32
    %c0_i32_0 = arith.constant 0 : i32
    %c0_i32_1 = arith.constant 0 : i32
    return %c0_i32, %c0_i32_0 : i32, i32
  }
  func.func @transform_2(%arg0: i32, %arg1: memref<16xi32, #tpu.memory_space<smem>>) -> (i32, i32) {
    %c0_i32 = arith.constant 0 : i32
    %c0_i32_0 = arith.constant 0 : i32
    %c0_i32_1 = arith.constant 0 : i32
    return %c0_i32, %c0_i32_0 : i32, i32
  }
  func.func @transform_3(%arg0: i32, %arg1: memref<16xi32, #tpu.memory_space<smem>>) -> (i32, i32) {
    %c0_i32 = arith.constant 0 : i32
    %c0_i32_0 = arith.constant 0 : i32
    %c0_i32_1 = arith.constant 0 : i32
    return %c0_i32, %c0_i32_0 : i32, i32
  }
  func.func @transform_4(%arg0: i32, %arg1: memref<16xi32, #tpu.memory_space<smem>>) -> (i32, i32) {
    %c0_i32 = arith.constant 0 : i32
    %c0_i32_0 = arith.constant 0 : i32
    return %arg0, %c0_i32 : i32, i32
  }
}

</mosaic_0001>

<llo_original>
// kernel: tpu_custom_call.1
$region0: #{tpu_custom_call.1}
  #allocation0 [shape = 'u32[]', space=smem, size = 0x4, offset = 0x4, fixed_abs, tag = 'smem constant byte address 0x4 - core index']
  #allocation1 [shape = 'u32[144,128]{1,0:T(1,128)}', space=vmem, size = 0x12000, scoped, tag = 'internal scratch']
  #allocation2 [shape = 'f32[2,8,128]{2,1,0:T(8,128)}', space=vmem, size = 0x2000, scoped, tag = 'scratch operand']
  #allocation3 [shape = 's32[2]{0}', space=sflag, size = 0x8, scoped, tag = 'scratch operand']
  #allocation4 [shape = 's32[1]{0}', space=sflag, size = 0x4, scoped, tag = 'scoped memory for tpu_custom_call.1']
  #allocation5 [shape = 'u8[512]{0}', space=smem, size = 0x200, scoped, tag = 'prefetched SMEM operand 0']
  #allocation10 [shape = 's32[]', space=sflag, size = 0x4, offset = 0, fixed_abs, tag = 'sflag constant byte address 0x0 - dummy sync flag']
  #allocation11 [shape = 's32[]', space=sflag, size = 0x4, offset = 0, fixed_abs, tag = 'sflag constant byte address 0x0 - dummy sync flag']
  #allocation12 [shape = 'u32[]', space=smem, size = 0x4, offset = 0x44, fixed_abs, tag = 'smem constant byte address 0x44 - assertion arg 0']
  #allocation13 [shape = 'u32[]', space=smem, size = 0x4, offset = 0x48, fixed_abs, tag = 'smem constant byte address 0x48 - assertion arg 1']
  #allocation14 [shape = 's32[]', space=sflag, size = 0x4, offset = 0, fixed_abs, tag = 'sflag constant byte address 0x0 - dummy sync flag']
  #allocation15 [shape = 's32[]', space=sflag, size = 0x4, offset = 0, fixed_abs, tag = 'sflag constant byte address 0x0 - dummy sync flag']
  #allocation16 [shape = 's32[]', space=sflag, size = 0x4, offset = 0, fixed_abs, tag = 'sflag constant byte address 0x0 - dummy sync flag']
  #allocation17 [shape = 's32[]', space=sflag, size = 0x4, offset = 0, fixed_abs, tag = 'sflag constant byte address 0x0 - dummy sync flag']
  #allocation18 [shape = 's32[]', space=sflag, size = 0x4, offset = 0, fixed_abs, tag = 'sflag constant byte address 0x0 - dummy sync flag']
  #allocation19 [shape = 's32[]', space=sflag, size = 0x4, offset = 0, fixed_abs, tag = 'sflag constant byte address 0x0 - dummy sync flag']
  #allocation20 [shape = 's32[]', space=sflag, size = 0x4, offset = 0, fixed_abs, tag = 'sflag constant byte address 0x0 - dummy sync flag']
  #allocation21 [shape = 's32[]', space=sflag, size = 0x4, offset = 0, fixed_abs, tag = 'sflag constant byte address 0x0 - dummy sync flag']
  #allocation22 [shape = 's32[]', space=sflag, size = 0x4, offset = 0, fixed_abs, tag = 'sflag constant byte address 0x0 - dummy sync flag']
  #allocation23 [shape = 's32[]', space=sflag, size = 0x4, offset = 0, fixed_abs, tag = 'sflag constant byte address 0x0 - dummy sync flag']
  #allocation24 [shape = 's32[]', space=sflag, size = 0x4, offset = 0, fixed_abs, tag = 'sflag constant byte address 0x0 - dummy sync flag']
  #allocation25 [shape = 's32[]', space=sflag, size = 0x4, offset = 0, fixed_abs, tag = 'sflag constant byte address 0x0 - dummy sync flag']
  #allocation26 [shape = 's32[]', space=sflag, size = 0x4, offset = 0, fixed_abs, tag = 'sflag constant byte address 0x0 - dummy sync flag']
  #allocation27 [shape = 's32[]', space=sflag, size = 0x4, offset = 0, fixed_abs, tag = 'sflag constant byte address 0x0 - dummy sync flag']
  #allocation28 [shape = 's32[]', space=sflag, size = 0x4, offset = 0, fixed_abs, tag = 'sflag constant byte address 0x0 - dummy sync flag']
  #allocation29 [shape = 's32[]', space=sflag, size = 0x4, offset = 0, fixed_abs, tag = 'sflag constant byte address 0x0 - dummy sync flag']
  #allocation30 [shape = 's32[]', space=sflag, size = 0x4, offset = 0, fixed_abs, tag = 'sflag constant byte address 0x0 - dummy sync flag']
  #allocation31 [shape = 's32[]', space=sflag, size = 0x4, offset = 0, fixed_abs, tag = 'sflag constant byte address 0x0 - dummy sync flag']
  #allocation32 [shape = 's32[]', space=sflag, size = 0x4, offset = 0, fixed_abs, tag = 'sflag constant byte address 0x0 - dummy sync flag']
  #allocation33 [shape = 's32[]', space=sflag, size = 0x4, offset = 0, fixed_abs, tag = 'sflag constant byte address 0x0 - dummy sync flag']
  #allocation34 [shape = 's32[]', space=sflag, size = 0x4, offset = 0, fixed_abs, tag = 'sflag constant byte address 0x0 - dummy sync flag']
  #allocation35 [shape = 's32[]', space=sflag, size = 0x4, offset = 0, fixed_abs, tag = 'sflag constant byte address 0x0 - dummy sync flag']
  #allocation36 [shape = 's32[]', space=sflag, size = 0x4, offset = 0, fixed_abs, tag = 'sflag constant byte address 0x0 - dummy sync flag']
  #allocation37 [shape = 's32[]', space=sflag, size = 0x4, offset = 0, fixed_abs, tag = 'sflag constant byte address 0x0 - dummy sync flag']
  #allocation38 [shape = 's32[]', space=sflag, size = 0x4, offset = 0, fixed_abs, tag = 'sflag constant byte address 0x0 - dummy sync flag']
  #allocation39 [shape = 's32[]', space=sflag, size = 0x4, offset = 0, fixed_abs, tag = 'sflag constant byte address 0x0 - dummy sync flag']
  #allocation40 [shape = 's32[]', space=sflag, size = 0x4, offset = 0, fixed_abs, tag = 'sflag constant byte address 0x0 - dummy sync flag']
  #allocation41 [shape = 's32[]', space=sflag, size = 0x4, offset = 0, fixed_abs, tag = 'sflag constant byte address 0x0 - dummy sync flag']
  #allocation42 [shape = 's32[]', space=sflag, size = 0x4, offset = 0, fixed_abs, tag = 'sflag constant byte address 0x0 - dummy sync flag']
  #allocation43 [shape = 's32[]', space=sflag, size = 0x4, offset = 0, fixed_abs, tag = 'sflag constant byte address 0x0 - dummy sync flag']
  %s0 = inlined_call_operand.hbm [shape: s32[16], index: 0, kind: input, shape index: {}]
  %s1 = inlined_call_operand.hbm [shape: f32[64,128], index: 1, kind: input, shape index: {}]
  %s2 = inlined_call_operand.hbm [shape: f32[8,128], index: 2, kind: input, shape index: {}]
  %s3 = inlined_call_operand.vmem [shape: f32[1,128], index: 3, kind: input, shape index: {}]
  %s4 = inlined_call_operand.vmem [shape: f32[1,128], index: 4, kind: input, shape index: {}]
  %s5 = inlined_call_operand.hbm [shape: f32[16,128], index: 5, kind: output, shape index: {}]
  %s6 = sld [smem:[#allocation0]]
  $region90: #{tpu_custom_call.1} parent=0
    _
  %s8 = ssub.s32 1, %s6
  %s9 = scalar_select 0, %s8, %s6
  %11 = dma.hbm_to_smem %s0, 16, [#allocation5], [#allocation4]
  %12 = dma.done [#allocation4], 16
  %13 = sfence
  $region1: #{tpu_custom_call.1} parent=0
    #allocation6 [shape = 'u8[4096]{0}', space=vmem, size = 0x1000, scoped, tag = 'input window, operand 2, single buffered']
    #allocation7 [shape = 's32[1]{0}', space=sflag, size = 0x4, scoped, tag = 'scoped memory for tpu_custom_call.1']
    #allocation8 [shape = 's32[1]{0}', space=sflag, size = 0x4, scoped, tag = 'scoped memory for tpu_custom_call.1']
    #allocation9 [shape = 'u8[8192]{0}', space=vmem, size = 0x2000, scoped, tag = 'output window, operand 0, single buffered']
    %14 = vsyncpa [#allocation7], 0
    %15 = vsyncpa [#allocation8], 0
    // Predicated region
    $region2: #{tpu_custom_call.1} parent=1 // pred_check
      _
    $region3: #{tpu_custom_call.1} parent=1 // pred_check_branch
      %17 = sbr.rel (0) target = $region5
    $region4: #{tpu_custom_call.1} parent=1 // pred_region
      %s19 = ssub.s32 128, 128
      %20 = vsyncadd [#allocation7], %s19
      %s22 = sshll.u32 [#allocation6], 4
      %s23 = int_to_ptr.vmem [resolvable:$true] %s22
      %25 = dma.hbm_to_vmem [thread:$0]  %s2, 128, %s23, [#allocation7]
    $region5: #{tpu_custom_call.1} parent=1 // pred_fallthru
      _
    // Predicated region
    $region6: #{tpu_custom_call.1} parent=1 // pred_check
      _
    $region7: #{tpu_custom_call.1} parent=1 // pred_check_branch
      %27 = sbr.rel (0) target = $region9
    $region8: #{tpu_custom_call.1} parent=1 // pred_region
      _
    $region9: #{tpu_custom_call.1} parent=1 // pred_fallthru
      _
    // Predicated region
    $region10: #{tpu_custom_call.1} parent=1 // pred_check
      _
    $region11: #{tpu_custom_call.1} parent=1 // pred_check_branch
      %29 = sbr.rel (0) target = $region13
    $region12: #{tpu_custom_call.1} parent=1 // pred_region
      _
    $region13: #{tpu_custom_call.1} parent=1 // pred_fallthru
      _
    // Predicated region
    $region14: #{tpu_custom_call.1} parent=1 // pred_check
      _
    $region15: #{tpu_custom_call.1} parent=1 // pred_check_branch
      %31 = sbr.rel (0) target = $region17
    $region16: #{tpu_custom_call.1} parent=1 // pred_region
      %32 = dma.done [#allocation7], 128
    $region17: #{tpu_custom_call.1} parent=1 // pred_fallthru
      _
    %s33 = smul.u32 0, 16
    %v34 = vld [vmem:[%s3] sm:$0x1]
    %v35 = vld [vmem:[%s4] sm:$0x1]
    %v36 = vld [vmem:[#allocation6] sm:$0xff]
    %s37 = sld [smem:[#allocation5 + %s33]]
    %s38 = smul.addr %s37, 16
    %s39 = scalar_lea.hbm %s1, %s38
    // Predicated region
    $region18: #{tpu_custom_call.1} parent=1 // pred_check
      _
    $region19: #{tpu_custom_call.1} parent=1 // pred_check_branch
      %41 = sbr.rel target = $region21
    $region20: #{tpu_custom_call.1} parent=1 // pred_region
      %42 = sst [smem:[#allocation12]] [#allocation11]
      %43 = sst [smem:[#allocation13]] [#allocation10]
    $region21: #{tpu_custom_call.1} parent=1 // pred_fallthru
      _
    %45 = shalt.err (0)
    %s47 = sshll.u32 [#allocation2], 4
    %s48 = int_to_ptr.vmem [resolvable:$true] %s47
    %50 = dma.hbm_to_vmem [thread:$0]  %s39, 16, %s48, [#allocation3]
    %s51 = sadd.s32 %s33, 1
    %s52 = sld [smem:[#allocation5 + %s51]]
    %s53 = smul.addr %s52, 16
    %s54 = scalar_lea.hbm %s1, %s53
    %s55 = scalar_lea.vmem [#allocation2], 1
    // Predicated region
    $region22: #{tpu_custom_call.1} parent=1 // pred_check
      _
    $region23: #{tpu_custom_call.1} parent=1 // pred_check_branch
      %57 = sbr.rel target = $region25
    $region24: #{tpu_custom_call.1} parent=1 // pred_region
      %58 = sst [smem:[#allocation12]] [#allocation15]
      %59 = sst [smem:[#allocation13]] [#allocation14]
    $region25: #{tpu_custom_call.1} parent=1 // pred_fallthru
      _
    %61 = shalt.err (0)
    %s63 = sshll.u32 %s55, 4
    %s64 = int_to_ptr.vmem [resolvable:$true] %s63
    %66 = dma.hbm_to_vmem [thread:$0]  %s54, 16, %s64, [#allocation3]
    %s67 = sadd.s32 %s33, 2
    %s68 = sld [smem:[#allocation5 + %s67]]
    %s69 = smul.addr %s68, 16
    %s70 = scalar_lea.hbm %s1, %s69
    %s71 = scalar_lea.vmem [#allocation2], 2
    // Predicated region
    $region26: #{tpu_custom_call.1} parent=1 // pred_check
      _
    $region27: #{tpu_custom_call.1} parent=1 // pred_check_branch
      %73 = sbr.rel target = $region29
    $region28: #{tpu_custom_call.1} parent=1 // pred_region
      %74 = sst [smem:[#allocation12]] [#allocation17]
      %75 = sst [smem:[#allocation13]] [#allocation16]
    $region29: #{tpu_custom_call.1} parent=1 // pred_fallthru
      _
    %77 = shalt.err (0)
    %s79 = sshll.u32 %s71, 4
    %s80 = int_to_ptr.vmem [resolvable:$true] %s79
    %82 = dma.hbm_to_vmem [thread:$0]  %s70, 16, %s80, [#allocation3]
    %s83 = sadd.s32 %s33, 3
    %s84 = sld [smem:[#allocation5 + %s83]]
    %s85 = smul.addr %s84, 16
    %s86 = scalar_lea.hbm %s1, %s85
    %s87 = scalar_lea.vmem [#allocation2], 3
    // Predicated region
    $region30: #{tpu_custom_call.1} parent=1 // pred_check
      _
    $region31: #{tpu_custom_call.1} parent=1 // pred_check_branch
      %89 = sbr.rel target = $region33
    $region32: #{tpu_custom_call.1} parent=1 // pred_region
      %90 = sst [smem:[#allocation12]] [#allocation19]
      %91 = sst [smem:[#allocation13]] [#allocation18]
    $region33: #{tpu_custom_call.1} parent=1 // pred_fallthru
      _
    %93 = shalt.err (0)
    %s95 = sshll.u32 %s87, 4
    %s96 = int_to_ptr.vmem [resolvable:$true] %s95
    %98 = dma.hbm_to_vmem [thread:$0]  %s86, 16, %s96, [#allocation3]
    %s99 = sadd.s32 %s33, 4
    %s100 = sld [smem:[#allocation5 + %s99]]
    %s101 = smul.addr %s100, 16
    %s102 = scalar_lea.hbm %s1, %s101
    %s103 = scalar_lea.vmem [#allocation2], 4
    // Predicated region
    $region34: #{tpu_custom_call.1} parent=1 // pred_check
      _
    $region35: #{tpu_custom_call.1} parent=1 // pred_check_branch
      %105 = sbr.rel target = $region37
    $region36: #{tpu_custom_call.1} parent=1 // pred_region
      %106 = sst [smem:[#allocation12]] [#allocation21]
      %107 = sst [smem:[#allocation13]] [#allocation20]
    $region37: #{tpu_custom_call.1} parent=1 // pred_fallthru
      _
    %109 = shalt.err (0)
    %s111 = sshll.u32 %s103, 4
    %s112 = int_to_ptr.vmem [resolvable:$true] %s111
    %114 = dma.hbm_to_vmem [thread:$0]  %s102, 16, %s112, [#allocation3]
    %s115 = sadd.s32 %s33, 5
    %s116 = sld [smem:[#allocation5 + %s115]]
    %s117 = smul.addr %s116, 16
    %s118 = scalar_lea.hbm %s1, %s117
    %s119 = scalar_lea.vmem [#allocation2], 5
    // Predicated region
    $region38: #{tpu_custom_call.1} parent=1 // pred_check
      _
    $region39: #{tpu_custom_call.1} parent=1 // pred_check_branch
      %121 = sbr.rel target = $region41
    $region40: #{tpu_custom_call.1} parent=1 // pred_region
      %122 = sst [smem:[#allocation12]] [#allocation23]
      %123 = sst [smem:[#allocation13]] [#allocation22]
    $region41: #{tpu_custom_call.1} parent=1 // pred_fallthru
      _
    %125 = shalt.err (0)
    %s127 = sshll.u32 %s119, 4
    %s128 = int_to_ptr.vmem [resolvable:$true] %s127
    %130 = dma.hbm_to_vmem [thread:$0]  %s118, 16, %s128, [#allocation3]
    %s131 = sadd.s32 %s33, 6
    %s132 = sld [smem:[#allocation5 + %s131]]
    %s133 = smul.addr %s132, 16
    %s134 = scalar_lea.hbm %s1, %s133
    %s135 = scalar_lea.vmem [#allocation2], 6
    // Predicated region
    $region42: #{tpu_custom_call.1} parent=1 // pred_check
      _
    $region43: #{tpu_custom_call.1} parent=1 // pred_check_branch
      %137 = sbr.rel target = $region45
    $region44: #{tpu_custom_call.1} parent=1 // pred_region
      %138 = sst [smem:[#allocation12]] [#allocation25]
      %139 = sst [smem:[#allocation13]] [#allocation24]
    $region45: #{tpu_custom_call.1} parent=1 // pred_fallthru
      _
    %141 = shalt.err (0)
    %s143 = sshll.u32 %s135, 4
    %s144 = int_to_ptr.vmem [resolvable:$true] %s143
    %146 = dma.hbm_to_vmem [thread:$0]  %s134, 16, %s144, [#allocation3]
    %s147 = sadd.s32 %s33, 7
    %s148 = sld [smem:[#allocation5 + %s147]]
    %s149 = smul.addr %s148, 16
    %s150 = scalar_lea.hbm %s1, %s149
    %s151 = scalar_lea.vmem [#allocation2], 7
    // Predicated region
    $region46: #{tpu_custom_call.1} parent=1 // pred_check
      _
    $region47: #{tpu_custom_call.1} parent=1 // pred_check_branch
      %153 = sbr.rel target = $region49
    $region48: #{tpu_custom_call.1} parent=1 // pred_region
      %154 = sst [smem:[#allocation12]] [#allocation27]
      %155 = sst [smem:[#allocation13]] [#allocation26]
    $region49: #{tpu_custom_call.1} parent=1 // pred_fallthru
      _
    %157 = shalt.err (0)
    %s159 = sshll.u32 %s151, 4
    %s160 = int_to_ptr.vmem [resolvable:$true] %s159
    %162 = dma.hbm_to_vmem [thread:$0]  %s150, 16, %s160, [#allocation3]
    %s163 = sadd.s32 %s33, 8
    %s164 = sld [smem:[#allocation5 + %s163]]
    %s165 = smul.addr %s164, 16
    %s166 = scalar_lea.hbm %s1, %s165
    %s167 = scalar_lea.vmem [#allocation2], 8
    %s168 = scalar_lea.sflag [#allocation3], 1
    // Predicated region
    $region50: #{tpu_custom_call.1} parent=1 // pred_check
      _
    $region51: #{tpu_custom_call.1} parent=1 // pred_check_branch
      %170 = sbr.rel target = $region53
    $region52: #{tpu_custom_call.1} parent=1 // pred_region
      %171 = sst [smem:[#allocation12]] [#allocation29]
      %172 = sst [smem:[#allocation13]] [#allocation28]
    $region53: #{tpu_custom_call.1} parent=1 // pred_fallthru
      _
    %174 = shalt.err (0)
    %s176 = sshll.u32 %s167, 4
    %s177 = int_to_ptr.vmem [resolvable:$true] %s176
    %179 = dma.hbm_to_vmem [thread:$0]  %s166, 16, %s177, %s168
    %s180 = sadd.s32 %s33, 9
    %s181 = sld [smem:[#allocation5 + %s180]]
    %s182 = smul.addr %s181, 16
    %s183 = scalar_lea.hbm %s1, %s182
    %s184 = scalar_lea.vmem [#allocation2], 9
    // Predicated region
    $region54: #{tpu_custom_call.1} parent=1 // pred_check
      _
    $region55: #{tpu_custom_call.1} parent=1 // pred_check_branch
      %186 = sbr.rel target = $region57
    $region56: #{tpu_custom_call.1} parent=1 // pred_region
      %187 = sst [smem:[#allocation12]] [#allocation31]
      %188 = sst [smem:[#allocation13]] [#allocation30]
    $region57: #{tpu_custom_call.1} parent=1 // pred_fallthru
      _
    %190 = shalt.err (0)
    %s192 = sshll.u32 %s184, 4
    %s193 = int_to_ptr.vmem [resolvable:$true] %s192
    %195 = dma.hbm_to_vmem [thread:$0]  %s183, 16, %s193, %s168
    %s196 = sadd.s32 %s33, 10
    %s197 = sld [smem:[#allocation5 + %s196]]
    %s198 = smul.addr %s197, 16
    %s199 = scalar_lea.hbm %s1, %s198
    %s200 = scalar_lea.vmem [#allocation2], 10
    // Predicated region
    $region58: #{tpu_custom_call.1} parent=1 // pred_check
      _
    $region59: #{tpu_custom_call.1} parent=1 // pred_check_branch
      %202 = sbr.rel target = $region61
    $region60: #{tpu_custom_call.1} parent=1 // pred_region
      %203 = sst [smem:[#allocation12]] [#allocation33]
      %204 = sst [smem:[#allocation13]] [#allocation32]
    $region61: #{tpu_custom_call.1} parent=1 // pred_fallthru
      _
    %206 = shalt.err (0)
    %s208 = sshll.u32 %s200, 4
    %s209 = int_to_ptr.vmem [resolvable:$true] %s208
    %211 = dma.hbm_to_vmem [thread:$0]  %s199, 16, %s209, %s168
    %s212 = sadd.s32 %s33, 11
    %s213 = sld [smem:[#allocation5 + %s212]]
    %s214 = smul.addr %s213, 16
    %s215 = scalar_lea.hbm %s1, %s214
    %s216 = scalar_lea.vmem [#allocation2], 11
    // Predicated region
    $region62: #{tpu_custom_call.1} parent=1 // pred_check
      _
    $region63: #{tpu_custom_call.1} parent=1 // pred_check_branch
      %218 = sbr.rel target = $region65
    $region64: #{tpu_custom_call.1} parent=1 // pred_region
      %219 = sst [smem:[#allocation12]] [#allocation35]
      %220 = sst [smem:[#allocation13]] [#allocation34]
    $region65: #{tpu_custom_call.1} parent=1 // pred_fallthru
      _
    %222 = shalt.err (0)
    %s224 = sshll.u32 %s216, 4
    %s225 = int_to_ptr.vmem [resolvable:$true] %s224
    %227 = dma.hbm_to_vmem [thread:$0]  %s215, 16, %s225, %s168
    %s228 = sadd.s32 %s33, 12
    %s229 = sld [smem:[#allocation5 + %s228]]
    %s230 = smul.addr %s229, 16
    %s231 = scalar_lea.hbm %s1, %s230
    %s232 = scalar_lea.vmem [#allocation2], 12
    // Predicated region
    $region66: #{tpu_custom_call.1} parent=1 // pred_check
      _
    $region67: #{tpu_custom_call.1} parent=1 // pred_check_branch
      %234 = sbr.rel target = $region69
    $region68: #{tpu_custom_call.1} parent=1 // pred_region
      %235 = sst [smem:[#allocation12]] [#allocation37]
      %236 = sst [smem:[#allocation13]] [#allocation36]
    $region69: #{tpu_custom_call.1} parent=1 // pred_fallthru
      _
    %238 = shalt.err (0)
    %s240 = sshll.u32 %s232, 4
    %s241 = int_to_ptr.vmem [resolvable:$true] %s240
    %243 = dma.hbm_to_vmem [thread:$0]  %s231, 16, %s241, %s168
    %s244 = sadd.s32 %s33, 13
    %s245 = sld [smem:[#allocation5 + %s244]]
    %s246 = smul.addr %s245, 16
    %s247 = scalar_lea.hbm %s1, %s246
    %s248 = scalar_lea.vmem [#allocation2], 13
    // Predicated region
    $region70: #{tpu_custom_call.1} parent=1 // pred_check
      _
    $region71: #{tpu_custom_call.1} parent=1 // pred_check_branch
      %250 = sbr.rel target = $region73
    $region72: #{tpu_custom_call.1} parent=1 // pred_region
      %251 = sst [smem:[#allocation12]] [#allocation39]
      %252 = sst [smem:[#allocation13]] [#allocation38]
    $region73: #{tpu_custom_call.1} parent=1 // pred_fallthru
      _
    %254 = shalt.err (0)
    %s256 = sshll.u32 %s248, 4
    %s257 = int_to_ptr.vmem [resolvable:$true] %s256
    %259 = dma.hbm_to_vmem [thread:$0]  %s247, 16, %s257, %s168
    %s260 = sadd.s32 %s33, 14
    %s261 = sld [smem:[#allocation5 + %s260]]
    %s262 = smul.addr %s261, 16
    %s263 = scalar_lea.hbm %s1, %s262
    %s264 = scalar_lea.vmem [#allocation2], 14
    // Predicated region
    $region74: #{tpu_custom_call.1} parent=1 // pred_check
      _
    $region75: #{tpu_custom_call.1} parent=1 // pred_check_branch
      %266 = sbr.rel target = $region77
    $region76: #{tpu_custom_call.1} parent=1 // pred_region
      %267 = sst [smem:[#allocation12]] [#allocation41]
      %268 = sst [smem:[#allocation13]] [#allocation40]
    $region77: #{tpu_custom_call.1} parent=1 // pred_fallthru
      _
    %270 = shalt.err (0)
    %s272 = sshll.u32 %s264, 4
    %s273 = int_to_ptr.vmem [resolvable:$true] %s272
    %275 = dma.hbm_to_vmem [thread:$0]  %s263, 16, %s273, %s168
    %s276 = sadd.s32 %s33, 15
    %s277 = sld [smem:[#allocation5 + %s276]]
    %s278 = smul.addr %s277, 16
    %s279 = scalar_lea.hbm %s1, %s278
    %s280 = scalar_lea.vmem [#allocation2], 15
    // Predicated region
    $region78: #{tpu_custom_call.1} parent=1 // pred_check
      _
    $region79: #{tpu_custom_call.1} parent=1 // pred_check_branch
      %282 = sbr.rel target = $region81
    $region80: #{tpu_custom_call.1} parent=1 // pred_region
      %283 = sst [smem:[#allocation12]] [#allocation43]
      %284 = sst [smem:[#allocation13]] [#allocation42]
    $region81: #{tpu_custom_call.1} parent=1 // pred_fallthru
      _
    %286 = shalt.err (0)
    %s288 = sshll.u32 %s280, 4
    %s289 = int_to_ptr.vmem [resolvable:$true] %s288
    %291 = dma.hbm_to_vmem [thread:$0]  %s279, 16, %s289, %s168
    %s292 = smul.u32 8, 1
    %s293 = sshll.u32 %s292, 4
    %294 = dma.done [#allocation3], %s293
    %v295 = vld [vmem:[#allocation2] sm:$0xff]
    %v296 = vadd.f32 %v295, %v36
    %297 = vadd.xlane.f32.xlu0 %v296
    %v298 = vpop.xlane.xlu0 %297
    %v299 = vrcp.pop 128.0
    %v300 = vmul.f32 %v298, %v299
    %v301 = vsub.f32 %v296, %v300
    %v302 = vmul.f32 %v301, %v301
    %303 = vadd.xlane.f32.xlu0 %v302
    %v304 = vpop.xlane.xlu0 %303
    %v305 = vmul.f32 %v304, %v299
    %v306 = vadd.f32 %v305, 1e-12
    %v307 = vrsqrt.pop %v306
    %v308 = vmul.f32 %v301, %v307
    %v310 = vlaneseq
    %v311 = vshrl.u32 %v310, 7
    %v312 = vsub.s32 0, %v311
    %v313 = vrot.slane %v34, %v312
    %v315 = vmul.f32 %v308, %v313
    %v317 = vlaneseq
    %v318 = vshrl.u32 %v317, 7
    %v319 = vsub.s32 0, %v318
    %v320 = vrot.slane %v35, %v319
    %v322 = vadd.f32 %v315, %v320
    %323 = vst [vmem:[#allocation9] sm:$0xff] %v322
    %s324 = sshll.u32 %s292, 4
    %325 = dma.done %s168, %s324
    %v326 = vld [vmem:[%s167] sm:$0xff]
    %v327 = vadd.f32 %v326, %v36
    %328 = vadd.xlane.f32.xlu0 %v327
    %v329 = vpop.xlane.xlu0 %328
    %v330 = vmul.f32 %v329, %v299
    %v331 = vsub.f32 %v327, %v330
    %v332 = vmul.f32 %v331, %v331
    %333 = vadd.xlane.f32.xlu0 %v332
    %v334 = vpop.xlane.xlu0 %333
    %v335 = vmul.f32 %v334, %v299
    %v336 = vadd.f32 %v335, 1e-12
    %v337 = vrsqrt.pop %v336
    %v338 = vmul.f32 %v331, %v337
    %v339 = vmul.f32 %v338, %v313
    %v340 = vadd.f32 %v339, %v320
    %341 = vst [vmem:[#allocation9 + $0x8] sm:$0xff] %v340
    // Predicated region
    $region82: #{tpu_custom_call.1} parent=1 // pred_check
      _
    $region83: #{tpu_custom_call.1} parent=1 // pred_check_branch
      %343 = sbr.rel (0) target = $region85
    $region84: #{tpu_custom_call.1} parent=1 // pred_region
      %s345 = ssub.s32 256, 256
      %346 = vsyncadd [#allocation8], %s345
      %s347 = sshll.u32 [#allocation9], 4
      %s348 = int_to_ptr.vmem [resolvable:$true] %s347
      %353 = dma.vmem_to_hbm [thread:$0]  %s348, 256, %s5, [#allocation8], 128, 128, 8
    $region85: #{tpu_custom_call.1} parent=1 // pred_fallthru
      _
    // Predicated region
    $region86: #{tpu_custom_call.1} parent=1 // pred_check
      _
    $region87: #{tpu_custom_call.1} parent=1 // pred_check_branch
      %355 = sbr.rel (0) target = $region89
    $region88: #{tpu_custom_call.1} parent=1 // pred_region
      %356 = dma.done [#allocation8], 256
    $region89: #{tpu_custom_call.1} parent=1 // pred_fallthru
      _
    %357 = vsyncpa [#allocation7], 1
    %358 = vsyncpa [#allocation8], 1
  %359 = vsyncmov [#allocation3]
  %s360 = vpop.sfrf %359
  %p361 = scmp.eq.s32.totalorder %s360, 0
  %p362 = pneg %p361
  %364 = shalt.err (%p362)
  %s365 = scalar_lea.sflag [#allocation3], 1
  %366 = vsyncmov %s365
  %s367 = vpop.sfrf %366
  %p368 = scmp.eq.s32.totalorder %s367, 0
  %p369 = pneg %p368
  %371 = shalt.err (%p369)

</llo_original>
